<compile_context>
chip_gen: v5e
topology: v5e:2x2
jax: 0.10.0
libtpu: 0.0.40
codegen_flags: <defaults>
</compile_context>

<pallas_src>
import functools
import math

import jax
import jax.numpy as jnp
from jax.experimental import pallas as pl
from jax.experimental.pallas import tpu as pltpu

BN_EPS = 1e-3
VMEM_LIMIT = 40 * 1024 * 1024    # safe on v5e/v6e (128 MiB) and v7x (64 MiB)
_TILE_CAP = 1024                 # max spatial rows per pointwise tile


def _apply_act(y, act):
    if act == 'relu':
        return jnp.maximum(y, 0.0)
    if act == 'swish':
        return y * jax.nn.sigmoid(y)
    return y


def _mdconv_compute_dtype():
    """bf16 depthwise math on chips with a bf16 VPU (v6e / v7x), f32 otherwise."""
    try:
        kind = jax.devices()[0].device_kind.lower()
    except Exception:
        return jnp.bfloat16
    for old in ('v2', 'v3', 'v4', 'v5'):
        if old in kind:
            return jnp.float32
    return jnp.bfloat16


def _choose_tile(s, cap=_TILE_CAP):
    """Pick a spatial tile size.  Prefer a divisor of s (multiple of 8) so no
    pad / post-slice HBM round-trip is needed; fall back to padding."""
    if s <= cap:
        return s, s
    for d in range(cap - cap % 8, 7, -8):
        if s % d == 0:
            return d, s
    sp = ((s + cap - 1) // cap) * cap
    return cap, sp


# --------------------- plain pointwise (1x1 conv / FC) ----------------------

def _pw_kernel(x_ref, w_ref, b_ref, o_ref, *, act):
    y = jnp.dot(x_ref[0].astype(jnp.bfloat16), w_ref[...],
                preferred_element_type=jnp.float32)
    y = _apply_act(y + b_ref[...], act)
    o_ref[0] = y.astype(o_ref.dtype)


def pointwise(x_rows, w, b, act, out_dtype=jnp.bfloat16):
    """1x1 conv / FC on (N, S, Cin) rows.  bf16 MXU operands, BN folded."""
    n, s, cin = x_rows.shape
    cout = w.shape[1]
    ts, sp = _choose_tile(s)
    xp = x_rows if sp == s else jnp.pad(x_rows, ((0, 0), (0, sp - s), (0, 0)))
    y = pl.pallas_call(
        functools.partial(_pw_kernel, act=act),
        grid=(n, sp // ts),
        in_specs=[pl.BlockSpec((1, ts, cin), lambda bi, si: (bi, si, 0)),
                  pl.BlockSpec((cin, cout), lambda bi, si: (0, 0)),
                  pl.BlockSpec((1, cout), lambda bi, si: (0, 0))],
        out_specs=pl.BlockSpec((1, ts, cout), lambda bi, si: (bi, si, 0)),
        out_shape=jax.ShapeDtypeStruct((n, sp, cout), out_dtype),
        compiler_params=pltpu.CompilerParams(
            dimension_semantics=("parallel", "parallel"),
            vmem_limit_bytes=VMEM_LIMIT),
    )(xp, w, b.reshape(1, cout).astype(jnp.float32))
    return y if sp == s else y[:, :s, :]


# -------------- expansion 1x1 conv -> group-major (N, G, S, sub) ------------

def _expand_kernel(x_ref, w_ref, b_ref, o_ref, *, act):
    y = jnp.dot(x_ref[0].astype(jnp.bfloat16), w_ref[0],
                preferred_element_type=jnp.float32)
    y = _apply_act(y + b_ref[0], act)
    o_ref[0, 0] = y.astype(o_ref.dtype)


def expand_groupwise(x_rows, w_split, b_split, act):
    """Expansion 1x1 conv written directly in depthwise-group-major layout so
    the mdconv kernel never slices the lane axis per group."""
    n, s, cin = x_rows.shape
    g, _, sub = w_split.shape
    ts, sp = _choose_tile(s)
    xp = x_rows if sp == s else jnp.pad(x_rows, ((0, 0), (0, sp - s), (0, 0)))
    y = pl.pallas_call(
        functools.partial(_expand_kernel, act=act),
        grid=(n, sp // ts, g),   # group axis innermost: x tile DMA reused per group
        in_specs=[pl.BlockSpec((1, ts, cin), lambda bi, si, gi: (bi, si, 0)),
                  pl.BlockSpec((1, cin, sub), lambda bi, si, gi: (gi, 0, 0)),
                  pl.BlockSpec((1, 1, sub), lambda bi, si, gi: (gi, 0, 0))],
        out_specs=pl.BlockSpec((1, 1, ts, sub), lambda bi, si, gi: (bi, gi, si, 0)),
        out_shape=jax.ShapeDtypeStruct((n, g, sp, sub), jnp.bfloat16),
        compiler_params=pltpu.CompilerParams(
            dimension_semantics=("parallel", "parallel", "arbitrary"),
            vmem_limit_bytes=VMEM_LIMIT),
    )(xp, w_split, b_split)
    return y if sp == s else y[:, :, :s, :]


# ------------ projection 1x1 conv (group-reduction + SE gate + res) ---------

def _proj_kernel(x_ref, w_ref, b_ref, *rest, act, use_gate, use_res):
    i = 0
    gate_ref = res_ref = None
    if use_gate:
        gate_ref = rest[i]; i += 1
    if use_res:
        res_ref = rest[i]; i += 1
    o_ref, acc_ref = rest[i], rest[i + 1]
    gi = pl.program_id(2)

    @pl.when(gi == 0)
    def _():
        acc_ref[...] = jnp.zeros_like(acc_ref)

    x = x_ref[0, 0].astype(jnp.bfloat16)                    # (ts, sub)
    if use_gate:
        x = x * gate_ref[0, 0].astype(jnp.bfloat16)         # fused SE channel gate
    acc_ref[...] += jnp.dot(x, w_ref[0], preferred_element_type=jnp.float32)

    @pl.when(gi == pl.num_programs(2) - 1)
    def _():
        y = _apply_act(acc_ref[...] + b_ref[...], act)
        if use_res:
            y = y + res_ref[0].astype(jnp.float32)          # fused residual add
        o_ref[0] = y.astype(o_ref.dtype)


def project_groupwise(h_gm, poi_w, poi_b, act, gate=None, res_rows=None,
                      out_dtype=jnp.bfloat16):
    """Projection 1x1 conv consuming the group-major mdconv output directly:
    y = sum_g (x_g * gate_g) @ W_g (+ bias, + residual), accumulated over the
    group grid axis in a VMEM scratch."""
    n, g, s, sub = h_gm.shape
    cout = poi_w.shape[2]
    ts, sp = _choose_tile(s)
    hp = h_gm if sp == s else jnp.pad(h_gm, ((0, 0), (0, 0), (0, sp - s), (0, 0)))
    in_specs = [pl.BlockSpec((1, 1, ts, sub), lambda bi, si, gi: (bi, gi, si, 0)),
                pl.BlockSpec((1, sub, cout), lambda bi, si, gi: (gi, 0, 0)),
                pl.BlockSpec((1, cout), lambda bi, si, gi: (0, 0))]
    args = [hp, poi_w, poi_b.reshape(1, cout).astype(jnp.float32)]
    if gate is not None:
        in_specs.append(pl.BlockSpec((1, 1, 1, sub), lambda bi, si, gi: (bi, gi, 0, 0)))
        args.append(gate)
    if res_rows is not None:
        rp = res_rows if sp == s else jnp.pad(res_rows, ((0, 0), (0, sp - s), (0, 0)))
        in_specs.append(pl.BlockSpec((1, ts, cout), lambda bi, si, gi: (bi, si, 0)))
        args.append(rp)
    y = pl.pallas_call(
        functools.partial(_proj_kernel, act=act,
                          use_gate=gate is not None, use_res=res_rows is not None),
        grid=(n, sp // ts, g),
        in_specs=in_specs,
        out_specs=pl.BlockSpec((1, ts, cout), lambda bi, si, gi: (bi, si, 0)),
        out_shape=jax.ShapeDtypeStruct((n, sp, cout), out_dtype),
        scratch_shapes=[pltpu.VMEM((ts, cout), jnp.float32)],
        compiler_params=pltpu.CompilerParams(
            dimension_semantics=("parallel", "parallel", "arbitrary"),
            vmem_limit_bytes=VMEM_LIMIT),
    )(*args)
    return y if sp == s else y[:, :s, :]


# ------------------------------ SE FC kernel --------------------------------

def _se_fc_kernel(p_ref, w1_ref, b1_ref, w2_ref, b2_ref, o_ref, *, act):
    hid = jnp.dot(p_ref[...], w1_ref[...], preferred_element_type=jnp.float32)
    hid = _apply_act(hid + b1_ref[...], act)
    g = jnp.dot(hid, w2_ref[...], preferred_element_type=jnp.float32) + b2_ref[...]
    o_ref[...] = jax.nn.sigmoid(g)


def se_fc(pooled, w1, b1, w2, b2, act):
    """Two tiny SE FCs + sigmoid on the pooled (N, C) vector (pool itself is
    fused into the mdconv kernel)."""
    n, c = pooled.shape
    r = w1.shape[1]
    return pl.pallas_call(
        functools.partial(_se_fc_kernel, act=act),
        grid=(1,),
        in_specs=[pl.BlockSpec((n, c), lambda i: (0, 0)),
                  pl.BlockSpec((c, r), lambda i: (0, 0)),
                  pl.BlockSpec((1, r), lambda i: (0, 0)),
                  pl.BlockSpec((r, c), lambda i: (0, 0)),
                  pl.BlockSpec((1, c), lambda i: (0, 0))],
        out_specs=pl.BlockSpec((n, c), lambda i: (0, 0)),
        out_shape=jax.ShapeDtypeStruct((n, c), jnp.float32),
        compiler_params=pltpu.CompilerParams(
            dimension_semantics=("arbitrary",),
            vmem_limit_bytes=VMEM_LIMIT),
    )(pooled, w1, b1.reshape(1, r), w2, b2.reshape(1, c))


# ----------------------- mixed depthwise conv kernel ------------------------

def _mdconv_kernel(x_ref, w_ref, b_ref, *out_refs, kernel_sizes, pmax, stride,
                   act, th, compute_dtype, inv_count, use_pool):
    o_ref = out_refs[0]
    pool_ref = out_refs[1] if use_pool else None
    _, _, ho, wo, sub = o_ref.shape
    for g, k in enumerate(kernel_sizes):
        off = pmax - (k - 1) // 2
        psum = jnp.zeros((1, sub), jnp.float32) if use_pool else None
        r = 0
        while r < ho:                        # static strip loop: acc stays small
            t_h = min(th, ho - r)
            acc = jnp.zeros((t_h, wo, sub), jnp.float32)
            for i in range(k):
                for j in range(k):
                    ci, cj = off + i, off + j
                    idx = i * k + j
                    tap = w_ref[g, idx:idx + 1, :].reshape(1, 1, sub)
                    if stride == 1:
                        xs = x_ref[0, g, r + ci:r + ci + t_h, cj:cj + wo, :]
                    else:
                        # parity-folded input: plane g*4 + (h%2)*2 + (w%2)
                        gp = g * 4 + (ci % 2) * 2 + (cj % 2)
                        xs = x_ref[0, gp,
                                   r + ci // 2:r + ci // 2 + t_h,
                                   cj // 2:cj // 2 + wo, :]
                    acc = acc + xs.astype(compute_dtype) * tap
            y = _apply_act(acc + b_ref[g:g + 1, :].reshape(1, 1, sub), act)
            o_ref[0, g, r:r + t_h, :, :] = y.astype(o_ref.dtype)
            if use_pool:
                psum = psum + jnp.sum(jnp.sum(y, axis=0), axis=0, keepdims=True)
            r += t_h
        if use_pool:
            pool_ref[0, g:g + 1, :] = psum * inv_count


def mdconv(hgm, kernel_sizes, stride, w_stack, bias, act, use_pool, compute_dtype):
    """Mixed depthwise 'same' conv (+ folded BN + act) in group-major layout,
    with the SE global-average-pool fused in as a second (N, G, sub) output."""
    n, g, h, w_, sub = hgm.shape
    kmax = max(kernel_sizes)
    pmax = (kmax - 1) // 2
    # TODO(synk): the halo pad (and the stride-2 parity transpose below) are XLA
    # wrapper ops -> one extra HBM pass; in-kernel halo DMAs / strided loads
    # would remove them.
    xp = jnp.pad(hgm, ((0, 0), (0, 0), (pmax, pmax), (pmax, pmax), (0, 0)))
    if stride == 1:
        ho, wo = h, w_
        x_in = xp
    else:
        ho, wo = (h + 1) // 2, (w_ + 1) // 2
        hp, wp = xp.shape[2], xp.shape[3]
        hp2, wp2 = ((hp + 1) // 2) * 2, ((wp + 1) // 2) * 2
        if hp2 != hp or wp2 != wp:
            xp = jnp.pad(xp, ((0, 0), (0, 0), (0, hp2 - hp), (0, wp2 - wp), (0, 0)))
        x_in = xp.reshape(n, g, hp2 // 2, 2, wp2 // 2, 2, sub)
        x_in = x_in.transpose(0, 1, 3, 5, 2, 4, 6).reshape(
            n, g * 4, hp2 // 2, wp2 // 2, sub)
    th = int(max(1, min(ho, 16384 // max(1, wo * sub))))   # ~64 KiB f32 per strip
    out_shape = [jax.ShapeDtypeStruct((n, g, ho, wo, sub), jnp.bfloat16)]
    out_specs = [pl.BlockSpec((1, g, ho, wo, sub), lambda b: (b, 0, 0, 0, 0))]
    if use_pool:
        out_shape.append(jax.ShapeDtypeStruct((n, g, sub), jnp.float32))
        out_specs.append(pl.BlockSpec((1, g, sub), lambda b: (b, 0, 0)))
    res = pl.pallas_call(
        functools.partial(_mdconv_kernel, kernel_sizes=tuple(kernel_sizes),
                          pmax=pmax, stride=stride, act=act, th=th,
                          compute_dtype=compute_dtype,
                          inv_count=1.0 / float(ho * wo), use_pool=use_pool),
        # TODO(synk): add a 'parallel' output-row-strip grid axis for v7x megacore.
        grid=(n,),
        in_specs=[pl.BlockSpec((1,) + x_in.shape[1:], lambda b: (b, 0, 0, 0, 0)),
                  pl.BlockSpec(w_stack.shape, lambda b: (0, 0, 0)),
                  pl.BlockSpec(bias.shape, lambda b: (0, 0))],
        out_specs=out_specs if use_pool else out_specs[0],
        out_shape=out_shape if use_pool else out_shape[0],
        compiler_params=pltpu.CompilerParams(
            dimension_semantics=("parallel",),
            vmem_limit_bytes=VMEM_LIMIT),
    )(x_in, w_stack.astype(compute_dtype), bias)
    if use_pool:
        return res[0], res[1]
    return res, None


# ------------------------------ glue helpers --------------------------------

def _im2col(x, k, stride, pad):
    n, h, w_, c = x.shape
    xp = jnp.pad(x, ((0, 0), (pad, pad), (pad, pad), (0, 0)))
    ho = (h + 2 * pad - k) // stride + 1
    wo = (w_ + 2 * pad - k) // stride + 1
    cols = []
    for i in range(k):
        for j in range(k):
            cols.append(xp[:, i:i + (ho - 1) * stride + 1:stride,
                           j:j + (wo - 1) * stride + 1:stride, :])
    return jnp.concatenate(cols, axis=-1), ho, wo


MIXNET_S_SETTINGS = [
    # t, c, n, k, ek, pk, s, d, act, se
    [1, 16, 1, [3], [1], [1], 1, 1, 'relu', None],
    [6, 24, 1, [3], [1, 1], [1, 1], 2, 1, 'relu', None],
    [3, 24, 1, [3], [1, 1], [1, 1], 1, 1, 'relu', None],
    [6, 40, 1, [3, 5, 7], [1], [1], 2, 1, 'swish', 2],
    [6, 40, 3, [3, 5], [1, 1], [1, 1], 1, 1, 'swish', 2],
    [6, 80, 1, [3, 5, 7], [1], [1, 1], 2, 1, 'swish', 4],
    [6, 80, 2, [3, 5], [1], [1, 1], 1, 1, 'swish', 4],
    [6, 120, 1, [3, 5, 7], [1, 1], [1, 1], 1, 1, 'swish', 2],
    [3, 120, 2, [3, 5, 7, 9], [1, 1], [1, 1], 1, 1, 'swish', 2],
    [6, 200, 1, [3, 5, 7, 9, 11], [1], [1], 2, 1, 'swish', 2],
    [6, 200, 2, [3, 5, 7, 9], [1], [1, 1], 1, 1, 'swish', 2],
]


class _KeyGen:
    def __init__(self, seed=0):
        self._key = jax.random.PRNGKey(seed)

    def __call__(self):
        self._key, k = jax.random.split(self._key)
        return k


def _bn_eff(c):
    gamma = jnp.ones((c,), jnp.float32)
    beta = jnp.zeros((c,), jnp.float32)
    running_mean = jnp.zeros((c,), jnp.float32)
    running_var = jnp.ones((c,), jnp.float32)
    scale = gamma / jnp.sqrt(running_var + BN_EPS)
    bias = beta - running_mean * scale
    return scale, bias


def _conv_w(keys, shape, fan_out):
    std = math.sqrt(2.0 / fan_out)            # kaiming_normal_, mode='fan_out'
    return std * jax.random.normal(keys(), shape, dtype=jnp.float32)


def _block_diag(ws):
    g = len(ws)
    if g == 1:
        return ws[0]
    rows = sum(w.shape[0] for w in ws)
    cols = sum(w.shape[1] for w in ws)
    out = jnp.zeros((rows, cols), jnp.float32)
    r = c = 0
    for w in ws:
        out = out.at[r:r + w.shape[0], c:c + w.shape[1]].set(w)
        r += w.shape[0]
        c += w.shape[1]
    return out


def build_mixnet_params(num_classes=1000, seed=0):
    keys = _KeyGen(seed)
    params = {}
    stem_out = 16
    sc, bi = _bn_eff(stem_out)
    w = _conv_w(keys, (3 * 3 * 3, stem_out), fan_out=stem_out * 9)
    params['stem'] = {'w': (w * sc[None, :]).astype(jnp.bfloat16), 'b': bi}

    blocks = []
    in_ch = stem_out
    for t, c, reps, k, ek, pk, s, d, act, se in MIXNET_S_SETTINGS:
        for block_id in range(reps):
            stride = s if block_id == 0 else 1
            hidden = in_ch * t
            g_dw = len(k)
            sub = hidden // g_dw
            bp = {
                'expand_ratio': t,
                'kernel_sizes': tuple(k),
                'stride': stride,
                'act': act,
                'use_se': se is not None and se > 1,
                'use_residual': (in_ch == c and stride == 1),
            }
            if t != 1:
                ge = len(ek)
                ws = [_conv_w(keys, (in_ch // ge, hidden // ge), fan_out=hidden // ge)
                      for _ in range(ge)]
                sc, bi = _bn_eff(hidden)
                w_full = _block_diag(ws) * sc[None, :]          # (in_ch, hidden)
                # split output columns per depthwise group -> (G, in_ch, sub)
                bp['exp_w'] = jnp.stack(
                    [w_full[:, gg * sub:(gg + 1) * sub] for gg in range(g_dw)]
                ).astype(jnp.bfloat16)
                bp['exp_b'] = bi.reshape(g_dw, 1, sub)
            kmax = max(k)
            dw_ws = []
            for kk in k:
                wdw = _conv_w(keys, (kk * kk, sub), fan_out=sub * kk * kk)
                if kk < kmax:
                    wdw = jnp.pad(wdw, ((0, kmax * kmax - kk * kk), (0, 0)))
                dw_ws.append(wdw)
            dw = jnp.stack(dw_ws)                               # (G, kmax*kmax, sub)
            sc, bi = _bn_eff(hidden)
            bp['dw_w'] = dw * sc.reshape(g_dw, 1, sub)          # BN scale folded
            bp['dw_b'] = bi.reshape(g_dw, sub)
            if bp['use_se']:
                red = max(1, int(in_ch / se))
                bp['se'] = {
                    'w1': _conv_w(keys, (hidden, red), fan_out=red),
                    'b1': jnp.zeros((red,), jnp.float32),
                    'w2': _conv_w(keys, (red, hidden), fan_out=hidden),
                    'b2': jnp.zeros((hidden,), jnp.float32),
                }
            gp = len(pk)
            ws = [_conv_w(keys, (hidden // gp, c // gp), fan_out=c // gp)
                  for _ in range(gp)]
            sc, bi = _bn_eff(c)
            w_full = _block_diag(ws) * sc[None, :]              # (hidden, c)
            # split input rows per depthwise group -> (G, sub, c)
            bp['poi_w'] = jnp.stack(
                [w_full[gg * sub:(gg + 1) * sub, :] for gg in range(g_dw)]
            ).astype(jnp.bfloat16)
            bp['poi_b'] = bi
            blocks.append(bp)
            in_ch = c
    params['blocks'] = blocks

    last_ch = 1536
    sc, bi = _bn_eff(last_ch)
    w = _conv_w(keys, (in_ch, last_ch), fan_out=last_ch)
    params['last_feat'] = {'w': (w * sc[None, :]).astype(jnp.bfloat16), 'b': bi}

    init_range = 1.0 / math.sqrt(num_classes)
    params['classifier'] = {
        'w': jax.random.uniform(keys(), (last_ch, num_classes), jnp.float32,
                                -init_range, init_range).astype(jnp.bfloat16),
        'b': jnp.zeros((num_classes,), jnp.float32),
    }
    return params


def mixnet_forward(params, x_nchw):
    # eval-mode forward pass
    # TODO(synk): F.dropout / F.dropout2d are training-only paths; skipped in eval.
    compute_dtype = _mdconv_compute_dtype()
    x = jnp.transpose(x_nchw, (0, 2, 3, 1)).astype(jnp.float32)   # NCHW -> NHWC
    n = x.shape[0]

    # stem: 3x3 stride-2 conv + BN + ReLU (im2col glue + fused pointwise matmul)
    cols, cur_h, cur_w = _im2col(x, 3, 2, 1)
    x_rows = pointwise(cols.reshape(n, cur_h * cur_w, -1),
                       params['stem']['w'], params['stem']['b'], 'relu')

    for bp in params['blocks']:
        g = len(bp['kernel_sizes'])
        s_cur = cur_h * cur_w
        res_rows = x_rows
        if bp['expand_ratio'] != 1:
            hgm = expand_groupwise(x_rows, bp['exp_w'], bp['exp_b'], bp['act'])
        else:
            cin = x_rows.shape[-1]
            hgm = x_rows.reshape(n, s_cur, g, cin // g).transpose(0, 2, 1, 3)
        sub = hgm.shape[-1]
        hgm = hgm.reshape(n, g, cur_h, cur_w, sub)

        dw_out, pool = mdconv(hgm, bp['kernel_sizes'], bp['stride'],
                              bp['dw_w'], bp['dw_b'], bp['act'],
                              use_pool=bp['use_se'], compute_dtype=compute_dtype)
        _, _, ho, wo, _ = dw_out.shape

        gate = None
        if bp['use_se']:
            se = bp['se']
            pooled = pool.reshape(n, g * sub)
            gate = se_fc(pooled, se['w1'], se['b1'], se['w2'], se['b2'],
                         bp['act']).reshape(n, g, 1, sub)

        h_gm_rows = dw_out.reshape(n, g, ho * wo, sub)
        res_arg = res_rows if bp['use_residual'] else None
        # projection 1x1 conv + BN, with SE gating and residual add fused in
        x_rows = project_groupwise(h_gm_rows, bp['poi_w'], bp['poi_b'], 'none',
                                   gate=gate, res_rows=res_arg)
        cur_h, cur_w = ho, wo

    x_rows = pointwise(x_rows, params['last_feat']['w'],
                       params['last_feat']['b'], 'relu')
    feat = jnp.mean(x_rows.astype(jnp.float32), axis=1)     # adaptive_avg_pool2d(1,1)
    logits3 = pointwise(feat.reshape(n, 1, -1), params['classifier']['w'],
                        params['classifier']['b'], 'none', out_dtype=jnp.float32)
    return logits3[:, 0, :]


if __name__ == "__main__":
    key = jax.random.PRNGKey(0)
    x = jax.random.normal(key, (2, 3, 32, 32), dtype=jnp.float32)
    params = build_mixnet_params(num_classes=1000, seed=0)
    out = mixnet_forward(params, x)
    out = jax.block_until_ready(out)
    assert out.shape == (2, 1000), out.shape
    assert bool(jnp.all(jnp.isfinite(out)))
    print("KERNEL_OK")
</pallas_src>

<mosaic_0001>
module attributes {stable_mosaic.version = 11 : i64} {
  func.func @_pw_kernel(%arg0: i32, %arg1: i32, %arg2: memref<1x256x27xf32, #tpu.memory_space<vmem>>, %arg3: memref<27x16xbf16, #tpu.memory_space<vmem>>, %arg4: memref<1x16xf32, #tpu.memory_space<vmem>>, %arg5: memref<1x256x16xbf16, #tpu.memory_space<vmem>>) attributes {dimension_semantics = [#tpu.dimension_semantics<parallel>, #tpu.dimension_semantics<parallel>], iteration_bounds = array<i64: 2, 1>, scalar_prefetch = 0 : i64, scratch_operands = 0 : i64, tpu.core_type = #tpu.core_type<tc>, window_params = [{transform_indices = @transform_0, window_bounds = array<i64: 1, 256, 27>}, {pipeline_mode = #tpu.pipeline_mode<synchronous>, transform_indices = @transform_1, window_bounds = array<i64: 27, 16>}, {pipeline_mode = #tpu.pipeline_mode<synchronous>, transform_indices = @transform_2, window_bounds = array<i64: 1, 16>}, {transform_indices = @transform_3, window_bounds = array<i64: 1, 256, 16>}]} {
    %c0 = arith.constant 0 : index
    %c0_0 = arith.constant 0 : index
    %c0_1 = arith.constant 0 : index
    %0 = vector.load %arg2[%c0, %c0_0, %c0_1] : memref<1x256x27xf32, #tpu.memory_space<vmem>>, vector<1x256x27xf32>
    %1 = vector.shape_cast %0 : vector<1x256x27xf32> to vector<256x27xf32>
    %2 = arith.truncf %1 : vector<256x27xf32> to vector<256x27xbf16>
    %c0_2 = arith.constant 0 : index
    %c0_3 = arith.constant 0 : index
    %3 = vector.load %arg3[%c0_2, %c0_3] : memref<27x16xbf16, #tpu.memory_space<vmem>>, vector<27x16xbf16>
    %cst = arith.constant dense<0.000000e+00> : vector<256x16xf32>
    %4 = tpu.matmul %2, %3, %cst {dimension_numbers = #tpu.dot_dimension_numbers<[1], [0], [0], [1], [0, 0, 1, 1], [], []>} : vector<256x27xbf16>, vector<27x16xbf16>, vector<256x16xf32> -> vector<256x16xf32>
    %c0_4 = arith.constant 0 : index
    %c0_5 = arith.constant 0 : index
    %5 = vector.load %arg4[%c0_4, %c0_5] : memref<1x16xf32, #tpu.memory_space<vmem>>, vector<1x16xf32>
    %6 = vector.broadcast %5 : vector<1x16xf32> to vector<256x16xf32>
    %7 = arith.addf %4, %6 : vector<256x16xf32>
    %cst_6 = arith.constant 0.000000e+00 : f32
    %8 = vector.broadcast %cst_6 : f32 to vector<256x16xf32>
    %9 = arith.maximumf %7, %8 : vector<256x16xf32>
    %10 = arith.truncf %9 : vector<256x16xf32> to vector<256x16xbf16>
    %c0_7 = arith.constant 0 : index
    %c0_8 = arith.constant 0 : index
    %c0_9 = arith.constant 0 : index
    %11 = vector.load %arg5[%c0_7, %c0_8, %c0_9] : memref<1x256x16xbf16, #tpu.memory_space<vmem>>, vector<1x256x16xbf16>
    %12 = vector.shape_cast %11 : vector<1x256x16xbf16> to vector<256x16xbf16>
    %13 = vector.shape_cast %10 : vector<256x16xbf16> to vector<1x256x16xbf16>
    tpu.vector_store %arg5[%c0_7, %c0_8, %c0_9], %13 {strides = array<i32>} : memref<1x256x16xbf16, #tpu.memory_space<vmem>>, vector<1x256x16xbf16>,
    return
  }
  func.func @transform_0(%arg0: i32, %arg1: i32) -> (i32, i32, i32) {
    %c0_i32 = arith.constant 0 : i32
    %c0_i32_0 = arith.constant 0 : i32
    return %arg0, %arg1, %c0_i32 : i32, i32, i32
  }
  func.func @transform_1(%arg0: i32, %arg1: i32) -> (i32, i32) {
    %c0_i32 = arith.constant 0 : i32
    %c0_i32_0 = arith.constant 0 : i32
    %c0_i32_1 = arith.constant 0 : i32
    return %c0_i32, %c0_i32_0 : i32, i32
  }
  func.func @transform_2(%arg0: i32, %arg1: i32) -> (i32, i32) {
    %c0_i32 = arith.constant 0 : i32
    %c0_i32_0 = arith.constant 0 : i32
    %c0_i32_1 = arith.constant 0 : i32
    return %c0_i32, %c0_i32_0 : i32, i32
  }
  func.func @transform_3(%arg0: i32, %arg1: i32) -> (i32, i32, i32) {
    %c0_i32 = arith.constant 0 : i32
    %c0_i32_0 = arith.constant 0 : i32
    return %arg0, %arg1, %c0_i32 : i32, i32, i32
  }
}

</mosaic_0001>

<llo_original>
// kernel: tpu_custom_call.1
$region0: #{tpu_custom_call.1}
  #allocation0 [shape = 'u32[]', space=smem, size = 0x4, offset = 0x4, fixed_abs, tag = 'smem constant byte address 0x4 - core index']
  #allocation1 [shape = 'u32[72,128]{1,0:T(1,128)}', space=vmem, size = 0x9000, scoped, tag = 'internal scratch']
  %s0 = inlined_call_operand.vmem [shape: f32[2,256,27], index: 0, kind: input, shape index: {}]
  %s1 = inlined_call_operand.vmem [shape: bf16[27,16], index: 1, kind: input, shape index: {}]
  %s2 = inlined_call_operand.vmem [shape: f32[1,16], index: 2, kind: input, shape index: {}]
  %s3 = inlined_call_operand.vmem [shape: bf16[2,256,16], index: 3, kind: output, shape index: {}]
  %s4 = sld [smem:[#allocation0]]
  $region45: #{tpu_custom_call.1} parent=0
    _
  %s6 = ssub.s32 1, %s4
  %s7 = scalar_select 0, %s6, %s4
  loop: start=0, step=1, limit=4
  $region2: #{tpu_custom_call.1} parent=0 // loop_pre_header
    _
  $region3: #{tpu_custom_call.1} parent=0 // loop_header
    %s9 = sphi 0, %s13
    %p10 = scmp.ge.s32.totalorder %s9, 4
    %s16 = sphi 0, %s28
    %s17 = sphi 0, %s24
    %s18 = sphi 0, %s16
    %s19 = sphi 0, %s17
    %s20 = sphi 0, %s18
    %s21 = sphi 0, %s19
    %s33 = sphi 0, %s35
    %s36 = sphi 0, %s33
    %s37 = sphi 0, %s36
    %s53 = sphi 0, %s37
    %s57 = sphi 0, %s57
    %s59 = sphi 0, %s57
    %s60 = sphi 0, %s59
    %s74 = sphi 0, %s60
    %s78 = sphi 0, %s78
    %s80 = sphi 0, %s78
    %s81 = sphi 0, %s80
    %s95 = sphi 0, %s81
    %s103 = sphi 0, %s105
    %s106 = sphi 0, %s103
    %s107 = sphi 0, %s106
    %s123 = sphi 0, %s107
  $region4: #{tpu_custom_call.1} parent=0 // loop_header_branch
    %12 = sbr.rel (%p10) target = $region8
  $region5: #{tpu_custom_call.1} parent=0 // loop_body
    %s14 = ssub.s32 %s9, 1
    %s15 = ssub.s32 %s9, 2
    %s22 = sadd.s32 1, %s17
    %p23 = scmp.ge.s32.totalorder %s22, 1
    %s24 = scalar_select %p23, 0, %s22
    %s25 = sadd.s32 1, %s16
    %s26 = scalar_select %p23, %s25, %s16
    %p27 = scmp.ge.s32.totalorder %s26, 2
    %s28 = scalar_select %p27, 0, %s26
    %s29 = ssub.s32 %s16, %s28
    %s30 = ssub.s32 %s17, %s24
    %s31 = sor.u32 %s29, %s30
    %p32 = scmp.eq.s32.totalorder %s31, 0
    %s34 = sadd.s32 %s33, 1
    %s35 = scalar_select %p32, %s33, %s34
    %p38 = pneg %p32
    %p39 = scmp.eq.s32.totalorder %s9, 1
    %p40 = por %p38, %p39
    %p41 = scmp.ne.s32.totalorder %s33, %s36
    %p42 = scmp.eq.s32.totalorder %s9, 0
    %p43 = por %p41, %p42
    %p44 = scmp.ne.s32.totalorder %s33, %s36
    %p45 = scmp.eq.s32.totalorder %s14, 1
    %p46 = por %p44, %p45
    %p47 = scmp.ne.s32.totalorder %s36, %s37
    %p48 = scmp.eq.s32.totalorder %s14, 0
    %p49 = por %p47, %p48
    %p50 = scmp.ne.s32.totalorder %s36, %s37
    %p51 = scmp.eq.s32.totalorder %s15, 1
    %p52 = por %p50, %p51
    %p54 = scmp.ne.s32.totalorder %s37, %s53
    %p55 = scmp.eq.s32.totalorder %s15, 0
    %p56 = por %p54, %p55
    %s58 = sadd.s32 %s57, 1
    %p61 = scmp.eq.s32.totalorder %s9, 1
    %p62 = scmp.ne.s32.totalorder %s57, %s59
    %p63 = scmp.eq.s32.totalorder %s9, 0
    %p64 = por %p62, %p63
    %p65 = scmp.ne.s32.totalorder %s57, %s59
    %p66 = scmp.eq.s32.totalorder %s14, 1
    %p67 = por %p65, %p66
    %p68 = scmp.ne.s32.totalorder %s59, %s60
    %p69 = scmp.eq.s32.totalorder %s14, 0
    %p70 = por %p68, %p69
    %p71 = scmp.ne.s32.totalorder %s59, %s60
    %p72 = scmp.eq.s32.totalorder %s15, 1
    %p73 = por %p71, %p72
    %p75 = scmp.ne.s32.totalorder %s60, %s74
    %p76 = scmp.eq.s32.totalorder %s15, 0
    %p77 = por %p75, %p76
    %s79 = sadd.s32 %s78, 1
    %p82 = scmp.eq.s32.totalorder %s9, 1
    %p83 = scmp.ne.s32.totalorder %s78, %s80
    %p84 = scmp.eq.s32.totalorder %s9, 0
    %p85 = por %p83, %p84
    %p86 = scmp.ne.s32.totalorder %s78, %s80
    %p87 = scmp.eq.s32.totalorder %s14, 1
    %p88 = por %p86, %p87
    %p89 = scmp.ne.s32.totalorder %s80, %s81
    %p90 = scmp.eq.s32.totalorder %s14, 0
    %p91 = por %p89, %p90
    %p92 = scmp.ne.s32.totalorder %s80, %s81
    %p93 = scmp.eq.s32.totalorder %s15, 1
    %p94 = por %p92, %p93
    %p96 = scmp.ne.s32.totalorder %s81, %s95
    %p97 = scmp.eq.s32.totalorder %s15, 0
    %p98 = por %p96, %p97
    %s99 = ssub.s32 %s16, %s28
    %s100 = ssub.s32 %s17, %s24
    %s101 = sor.u32 %s99, %s100
    %p102 = scmp.eq.s32.totalorder %s101, 0
    %s104 = sadd.s32 %s103, 1
    %s105 = scalar_select %p102, %s103, %s104
    %p108 = pneg %p102
    %p109 = scmp.eq.s32.totalorder %s9, 1
    %p110 = por %p108, %p109
    %p111 = scmp.ne.s32.totalorder %s103, %s106
    %p112 = scmp.eq.s32.totalorder %s9, 0
    %p113 = por %p111, %p112
    %p114 = scmp.ne.s32.totalorder %s103, %s106
    %p115 = scmp.eq.s32.totalorder %s14, 1
    %p116 = por %p114, %p115
    %p117 = scmp.ne.s32.totalorder %s106, %s107
    %p118 = scmp.eq.s32.totalorder %s14, 0
    %p119 = por %p117, %p118
    %p120 = scmp.ne.s32.totalorder %s106, %s107
    %p121 = scmp.eq.s32.totalorder %s15, 1
    %p122 = por %p120, %p121
    %p124 = scmp.ne.s32.totalorder %s107, %s123
    %p125 = scmp.eq.s32.totalorder %s15, 0
    %p126 = por %p124, %p125
    %p127 = scmp.le.s32.totalorder 1, %s9
    %p128 = scmp.lt.s32.totalorder %s9, 3
    %p129 = pnand %p127, %p128
    %p130 = pneg %p129
    // Predicated region
    $region9: #{tpu_custom_call.1} parent=5 // pred_check
      _
    $region10: #{tpu_custom_call.1} parent=5 // pred_check_branch
      %132 = sbr.rel (%p129) target = $region12
    $region11: #{tpu_custom_call.1} parent=5 // pred_region
      %s133 = ssub.s32 %s9, 1
      // Predicated region
      $region13: #{tpu_custom_call.1} parent=11 // pred_check
        %p134 = pneg %p70
      $region14: #{tpu_custom_call.1} parent=11 // pred_check_branch
        %136 = sbr.rel (%p134) target = $region16
      $region15: #{tpu_custom_call.1} parent=11 // pred_region
        _
      $region16: #{tpu_custom_call.1} parent=11 // pred_fallthru
        _
      // Predicated region
      $region17: #{tpu_custom_call.1} parent=11 // pred_check
        %p137 = pneg %p91
      $region18: #{tpu_custom_call.1} parent=11 // pred_check_branch
        %139 = sbr.rel (%p137) target = $region20
      $region19: #{tpu_custom_call.1} parent=11 // pred_region
        _
      $region20: #{tpu_custom_call.1} parent=11 // pred_fallthru
        _
    $region12: #{tpu_custom_call.1} parent=5 // pred_fallthru
      _
    %p140 = scmp.lt.s32.totalorder %s9, 2
    // Predicated region
    $region21: #{tpu_custom_call.1} parent=5 // pred_check
      %p141 = pneg %p140
    $region22: #{tpu_custom_call.1} parent=5 // pred_check_branch
      %143 = sbr.rel (%p141) target = $region24
    $region23: #{tpu_custom_call.1} parent=5 // pred_region
      // Predicated region
      $region25: #{tpu_custom_call.1} parent=23 // pred_check
        %p144 = pneg %p43
      $region26: #{tpu_custom_call.1} parent=23 // pred_check_branch
        %146 = sbr.rel (%p144) target = $region28
      $region27: #{tpu_custom_call.1} parent=23 // pred_region
        %s147 = smul.u32 32, %s17
        %p148 = scmp.lt.s32.totalorder %s16, 1
        %s149 = scalar_select %p148, %s16, 1
        %p150 = scmp.lt.s32.totalorder %s147, 31
        %s151 = scalar_select %p150, %s147, 31
        %s152 = smul.addr %s149, 32
        %s153 = sadd.s32 %s151, %s152
        %s154 = smul.addr %s153, 8
        %s155 = scalar_lea.vmem %s0, %s154
        %s156 = smul.u32 32, %s17
      $region28: #{tpu_custom_call.1} parent=23 // pred_fallthru
        _
    $region24: #{tpu_custom_call.1} parent=5 // pred_fallthru
      _
    %p157 = scmp.le.s32.totalorder 1, %s9
    %p158 = scmp.lt.s32.totalorder %s9, 3
    %p159 = pnand %p157, %p158
    %p160 = pneg %p159
    // Predicated region
    $region29: #{tpu_custom_call.1} parent=5 // pred_check
      _
    $region30: #{tpu_custom_call.1} parent=5 // pred_check_branch
      %162 = sbr.rel (%p159) target = $region32
    $region31: #{tpu_custom_call.1} parent=5 // pred_region
      %s163 = ssub.s32 %s9, 1
      %s164 = smul.u32 32, %s19
      %p165 = scmp.lt.s32.totalorder %s18, 1
      %s166 = scalar_select %p165, %s18, 1
      %p167 = scmp.lt.s32.totalorder %s164, 31
      %s168 = scalar_select %p167, %s164, 31
      %s169 = smul.addr %s166, 32
      %s170 = sadd.s32 %s168, %s169
      %s171 = smul.addr %s170, 8
      %s172 = scalar_lea.vmem %s0, %s171
      %p173 = pneg %p49
      %p174 = pneg %p46
      %p175 = pneg %p70
      %p176 = pneg %p67
      %p177 = pneg %p91
      %p178 = pneg %p88
      %p179 = pneg %p119
      %p180 = pneg %p116
      %s181 = smul.u32 32, %s19
      %p182 = scmp.lt.s32.totalorder %s18, 1
      %s183 = scalar_select %p182, %s18, 1
      %p184 = scmp.lt.s32.totalorder %s181, 31
      %s185 = scalar_select %p184, %s181, 31
      %s186 = smul.addr %s183, 32
      %s187 = sadd.s32 %s185, %s186
      %s188 = smul.addr %s187, 4
      %s189 = scalar_lea.vmem %s3, %s188
      %s190 = smul.u32 32, %s19
      %p191 = scmp.lt.s32.totalorder %s18, 1
      %s192 = scalar_select %p191, %s18, 1
      %p193 = scmp.lt.s32.totalorder %s190, 31
      %s194 = scalar_select %p193, %s190, 31
      %s195 = smul.addr %s192, 32
      %s196 = sadd.s32 %s194, %s195
      %s197 = smul.addr %s196, 8
      %s198 = scalar_lea.vmem %s0, %s197
      %s199 = smul.u32 32, %s19
      %s200 = smul.u32 32, %s19
      %p201 = scmp.lt.s32.totalorder %s18, 1
      %s202 = scalar_select %p201, %s18, 1
      %p203 = scmp.lt.s32.totalorder %s200, 31
      %s204 = scalar_select %p203, %s200, 31
      %s205 = smul.addr %s202, 32
      %s206 = sadd.s32 %s204, %s205
      %s207 = smul.addr %s206, 4
      %s208 = scalar_lea.vmem %s3, %s207
      %s209 = smul.u32 32, %s19
      %v211 = vld [vmem:[%s198] sm:$0xff]
      %v212 = vld [vmem:[%s198 + $0x8] sm:$0xff]
      %v213 = vld [vmem:[%s198 + $0x10] sm:$0xff]
      %v214 = vld [vmem:[%s198 + $0x18] sm:$0xff]
      %v215 = vld [vmem:[%s198 + $0x20] sm:$0xff]
      %v216 = vld [vmem:[%s198 + $0x28] sm:$0xff]
      %v217 = vld [vmem:[%s198 + $0x30] sm:$0xff]
      %v218 = vld [vmem:[%s198 + $0x38] sm:$0xff]
      %v219 = vld [vmem:[%s198 + $0x40] sm:$0xff]
      %v220 = vld [vmem:[%s198 + $0x48] sm:$0xff]
      %v221 = vld [vmem:[%s198 + $0x50] sm:$0xff]
      %v222 = vld [vmem:[%s198 + $0x58] sm:$0xff]
      %v223 = vld [vmem:[%s198 + $0x60] sm:$0xff]
      %v224 = vld [vmem:[%s198 + $0x68] sm:$0xff]
      %v225 = vld [vmem:[%s198 + $0x70] sm:$0xff]
      %v226 = vld [vmem:[%s198 + $0x78] sm:$0xff]
      %v227 = vld [vmem:[%s198 + $0x80] sm:$0xff]
      %v228 = vld [vmem:[%s198 + $0x88] sm:$0xff]
      %v229 = vld [vmem:[%s198 + $0x90] sm:$0xff]
      %v230 = vld [vmem:[%s198 + $0x98] sm:$0xff]
      %v231 = vld [vmem:[%s198 + $0xa0] sm:$0xff]
      %v232 = vld [vmem:[%s198 + $0xa8] sm:$0xff]
      %v233 = vld [vmem:[%s198 + $0xb0] sm:$0xff]
      %v234 = vld [vmem:[%s198 + $0xb8] sm:$0xff]
      %v235 = vld [vmem:[%s198 + $0xc0] sm:$0xff]
      %v236 = vld [vmem:[%s198 + $0xc8] sm:$0xff]
      %v237 = vld [vmem:[%s198 + $0xd0] sm:$0xff]
      %v238 = vld [vmem:[%s198 + $0xd8] sm:$0xff]
      %v239 = vld [vmem:[%s198 + $0xe0] sm:$0xff]
      %v240 = vld [vmem:[%s198 + $0xe8] sm:$0xff]
      %v241 = vld [vmem:[%s198 + $0xf0] sm:$0xff]
      %v242 = vld [vmem:[%s198 + $0xf8] sm:$0xff]
      %v243 = vpack.c.bf16 %v212, %v211
      %v244 = vpack.c.bf16 %v214, %v213
      %v245 = vpack.c.bf16 %v216, %v215
      %v246 = vpack.c.bf16 %v218, %v217
      %v247 = vpack.c.bf16 %v220, %v219
      %v248 = vpack.c.bf16 %v222, %v221
      %v249 = vpack.c.bf16 %v224, %v223
      %v250 = vpack.c.bf16 %v226, %v225
      %v251 = vpack.c.bf16 %v228, %v227
      %v252 = vpack.c.bf16 %v230, %v229
      %v253 = vpack.c.bf16 %v232, %v231
      %v254 = vpack.c.bf16 %v234, %v233
      %v255 = vpack.c.bf16 %v236, %v235
      %v256 = vpack.c.bf16 %v238, %v237
      %v257 = vpack.c.bf16 %v240, %v239
      %v258 = vpack.c.bf16 %v242, %v241
      %v259 = vld [vmem:[%s1] sm:$0xf]
      %v260 = vld [vmem:[%s1 + $0x4] sm:$0xf]
      %v261 = vld [vmem:[%s1 + $0x8] sm:$0xf]
      %v262 = vld [vmem:[%s1 + $0xc] sm:$0x3]
      %v263 = vld [vmem:[%s2] sm:$0x1]
      %v265 = vperm.slane %v263, 0
      %v271 = vunpack.c.l.b16 %v259
      %v272 = vunpack.c.l.b16 %v260
      %v273 = vunpack.c.l.b16 %v261
      %v274 = vunpack.c.l.b16 %v262
      %v275 = vpack.c.b16 %v272, %v271
      %v276 = vpack.c.b16 %v274, %v273
      %vm278 = vcmask 220160
      %v280 = vsel %vm278, %v243, 0
      %v283 = vsel %vm278, %v244, 0
      %v286 = vsel %vm278, %v245, 0
      %v289 = vsel %vm278, %v246, 0
      %v292 = vsel %vm278, %v247, 0
      %v295 = vsel %vm278, %v248, 0
      %v298 = vsel %vm278, %v249, 0
      %v301 = vsel %vm278, %v250, 0
      %v304 = vsel %vm278, %v251, 0
      %v307 = vsel %vm278, %v252, 0
      %v310 = vsel %vm278, %v253, 0
      %v313 = vsel %vm278, %v254, 0
      %v316 = vsel %vm278, %v255, 0
      %v319 = vsel %vm278, %v256, 0
      %v322 = vsel %vm278, %v257, 0
      %v325 = vsel %vm278, %v258, 0
      %vm327 = vcmask 1044480
      %vm328 = vcmask 1045504
      %v329 = vsel %vm327, 4294967295, 65535
      %v330 = vsel %vm328, %v329, 0
      %v332 = vand.u32 %v276, %v330
      %334 = vmatpush.bf16.msra.mxu0 0
      %335 = vmatpush.bf16.msra.mxu0 0
      %336 = vmatpush.bf16.msra.mxu0 0
      %337 = vmatpush.bf16.msra.mxu0 0
      %338 = vmatpush.bf16.msra.mxu0 0
      %339 = vmatpush.bf16.msra.mxu0 0
      %340 = vmatpush.bf16.msra.mxu0 %v332
      %341 = vmatpush.bf16.msra.mxu0 %v275
      %342 = vmatmul.bf16.gmra.mxu0 %v280
      %v343 = vpop.f32.mrf.mxu0
      %v344 = vadd.f32 %v265, %v343
      %v345 = vpop.f32.mrf.mxu0
      %v346 = vadd.f32 %v265, %v345
      %347 = vmatmul.bf16.gmra.mxu0 %v283
      %v348 = vpop.f32.mrf.mxu0
      %v349 = vadd.f32 %v265, %v348
      %v350 = vpop.f32.mrf.mxu0
      %v351 = vadd.f32 %v265, %v350
      %352 = vmatmul.bf16.gmra.mxu0 %v286
      %v353 = vpop.f32.mrf.mxu0
      %v354 = vadd.f32 %v265, %v353
      %v355 = vpop.f32.mrf.mxu0
      %v356 = vadd.f32 %v265, %v355
      %357 = vmatmul.bf16.gmra.mxu0 %v289
      %v358 = vpop.f32.mrf.mxu0
      %v359 = vadd.f32 %v265, %v358
      %v360 = vpop.f32.mrf.mxu0
      %v361 = vadd.f32 %v265, %v360
      %362 = vmatmul.bf16.gmra.mxu0 %v292
      %v363 = vpop.f32.mrf.mxu0
      %v364 = vadd.f32 %v265, %v363
      %v365 = vpop.f32.mrf.mxu0
      %v366 = vadd.f32 %v265, %v365
      %367 = vmatmul.bf16.gmra.mxu0 %v295
      %v368 = vpop.f32.mrf.mxu0
      %v369 = vadd.f32 %v265, %v368
      %v370 = vpop.f32.mrf.mxu0
      %v371 = vadd.f32 %v265, %v370
      %372 = vmatmul.bf16.gmra.mxu0 %v298
      %v373 = vpop.f32.mrf.mxu0
      %v374 = vadd.f32 %v265, %v373
      %v375 = vpop.f32.mrf.mxu0
      %v376 = vadd.f32 %v265, %v375
      %377 = vmatmul.bf16.gmra.mxu0 %v301
      %v378 = vpop.f32.mrf.mxu0
      %v379 = vadd.f32 %v265, %v378
      %v380 = vpop.f32.mrf.mxu0
      %v381 = vadd.f32 %v265, %v380
      %382 = vmatmul.bf16.gmra.mxu0 %v304
      %v383 = vpop.f32.mrf.mxu0
      %v384 = vadd.f32 %v265, %v383
      %v385 = vpop.f32.mrf.mxu0
      %v386 = vadd.f32 %v265, %v385
      %387 = vmatmul.bf16.gmra.mxu0 %v307
      %v388 = vpop.f32.mrf.mxu0
      %v389 = vadd.f32 %v265, %v388
      %v390 = vpop.f32.mrf.mxu0
      %v391 = vadd.f32 %v265, %v390
      %392 = vmatmul.bf16.gmra.mxu0 %v310
      %v393 = vpop.f32.mrf.mxu0
      %v394 = vadd.f32 %v265, %v393
      %v395 = vpop.f32.mrf.mxu0
      %v396 = vadd.f32 %v265, %v395
      %397 = vmatmul.bf16.gmra.mxu0 %v313
      %v398 = vpop.f32.mrf.mxu0
      %v399 = vadd.f32 %v265, %v398
      %v400 = vpop.f32.mrf.mxu0
      %v401 = vadd.f32 %v265, %v400
      %402 = vmatmul.bf16.gmra.mxu0 %v316
      %v403 = vpop.f32.mrf.mxu0
      %v404 = vadd.f32 %v265, %v403
      %v405 = vpop.f32.mrf.mxu0
      %v406 = vadd.f32 %v265, %v405
      %407 = vmatmul.bf16.gmra.mxu0 %v319
      %v408 = vpop.f32.mrf.mxu0
      %v409 = vadd.f32 %v265, %v408
      %v410 = vpop.f32.mrf.mxu0
      %v411 = vadd.f32 %v265, %v410
      %412 = vmatmul.bf16.gmra.mxu0 %v322
      %v413 = vpop.f32.mrf.mxu0
      %v414 = vadd.f32 %v265, %v413
      %v415 = vpop.f32.mrf.mxu0
      %v416 = vadd.f32 %v265, %v415
      %417 = vmatmul.bf16.gmra.mxu0 %v325
      %v418 = vpop.f32.mrf.mxu0
      %v419 = vadd.f32 %v265, %v418
      %v420 = vpop.f32.mrf.mxu0
      %v421 = vadd.f32 %v265, %v420
      %422 = vdwg.mxu0
      %v423 = vmax.f32 %v344, 0.0
      %v424 = vmax.f32 %v346, 0.0
      %v425 = vmax.f32 %v349, 0.0
      %v426 = vmax.f32 %v351, 0.0
      %v427 = vmax.f32 %v354, 0.0
      %v428 = vmax.f32 %v356, 0.0
      %v429 = vmax.f32 %v359, 0.0
      %v430 = vmax.f32 %v361, 0.0
      %v431 = vmax.f32 %v364, 0.0
      %v432 = vmax.f32 %v366, 0.0
      %v433 = vmax.f32 %v369, 0.0
      %v434 = vmax.f32 %v371, 0.0
      %v435 = vmax.f32 %v374, 0.0
      %v436 = vmax.f32 %v376, 0.0
      %v437 = vmax.f32 %v379, 0.0
      %v438 = vmax.f32 %v381, 0.0
      %v439 = vmax.f32 %v384, 0.0
      %v440 = vmax.f32 %v386, 0.0
      %v441 = vmax.f32 %v389, 0.0
      %v442 = vmax.f32 %v391, 0.0
      %v443 = vmax.f32 %v394, 0.0
      %v444 = vmax.f32 %v396, 0.0
      %v445 = vmax.f32 %v399, 0.0
      %v446 = vmax.f32 %v401, 0.0
      %v447 = vmax.f32 %v404, 0.0
      %v448 = vmax.f32 %v406, 0.0
      %v449 = vmax.f32 %v409, 0.0
      %v450 = vmax.f32 %v411, 0.0
      %v451 = vmax.f32 %v414, 0.0
      %v452 = vmax.f32 %v416, 0.0
      %v453 = vmax.f32 %v419, 0.0
      %v454 = vmax.f32 %v421, 0.0
      %v455 = vpack.c.bf16 %v423, %v423
      %v456 = vpack.c.bf16 %v424, %v424
      %v457 = vpack.c.bf16 %v425, %v425
      %v458 = vpack.c.bf16 %v426, %v426
      %v459 = vpack.c.bf16 %v427, %v427
      %v460 = vpack.c.bf16 %v428, %v428
      %v461 = vpack.c.bf16 %v429, %v429
      %v462 = vpack.c.bf16 %v430, %v430
      %v463 = vpack.c.bf16 %v431, %v431
      %v464 = vpack.c.bf16 %v432, %v432
      %v465 = vpack.c.bf16 %v433, %v433
      %v466 = vpack.c.bf16 %v434, %v434
      %v467 = vpack.c.bf16 %v435, %v435
      %v468 = vpack.c.bf16 %v436, %v436
      %v469 = vpack.c.bf16 %v437, %v437
      %v470 = vpack.c.bf16 %v438, %v438
      %v471 = vpack.c.bf16 %v439, %v439
      %v472 = vpack.c.bf16 %v440, %v440
      %v473 = vpack.c.bf16 %v441, %v441
      %v474 = vpack.c.bf16 %v442, %v442
      %v475 = vpack.c.bf16 %v443, %v443
      %v476 = vpack.c.bf16 %v444, %v444
      %v477 = vpack.c.bf16 %v445, %v445
      %v478 = vpack.c.bf16 %v446, %v446
      %v479 = vpack.c.bf16 %v447, %v447
      %v480 = vpack.c.bf16 %v448, %v448
      %v481 = vpack.c.bf16 %v449, %v449
      %v482 = vpack.c.bf16 %v450, %v450
      %v483 = vpack.c.bf16 %v451, %v451
      %v484 = vpack.c.bf16 %v452, %v452
      %v485 = vpack.c.bf16 %v453, %v453
      %v486 = vpack.c.bf16 %v454, %v454
      %vm487 = vcmask 125952
      %488 = vst.msk [vmem:[%s208] sm:$0xf] %vm487, %v455
      %489 = vst.msk [vmem:[%s208 + $0x4] sm:$0xf] %vm487, %v456
      %490 = vst.msk [vmem:[%s208 + $0x8] sm:$0xf] %vm487, %v457
      %491 = vst.msk [vmem:[%s208 + $0xc] sm:$0xf] %vm487, %v458
      %492 = vst.msk [vmem:[%s208 + $0x10] sm:$0xf] %vm487, %v459
      %493 = vst.msk [vmem:[%s208 + $0x14] sm:$0xf] %vm487, %v460
      %494 = vst.msk [vmem:[%s208 + $0x18] sm:$0xf] %vm487, %v461
      %495 = vst.msk [vmem:[%s208 + $0x1c] sm:$0xf] %vm487, %v462
      %496 = vst.msk [vmem:[%s208 + $0x20] sm:$0xf] %vm487, %v463
      %497 = vst.msk [vmem:[%s208 + $0x24] sm:$0xf] %vm487, %v464
      %498 = vst.msk [vmem:[%s208 + $0x28] sm:$0xf] %vm487, %v465
      %499 = vst.msk [vmem:[%s208 + $0x2c] sm:$0xf] %vm487, %v466
      %500 = vst.msk [vmem:[%s208 + $0x30] sm:$0xf] %vm487, %v467
      %501 = vst.msk [vmem:[%s208 + $0x34] sm:$0xf] %vm487, %v468
      %502 = vst.msk [vmem:[%s208 + $0x38] sm:$0xf] %vm487, %v469
      %503 = vst.msk [vmem:[%s208 + $0x3c] sm:$0xf] %vm487, %v470
      %504 = vst.msk [vmem:[%s208 + $0x40] sm:$0xf] %vm487, %v471
      %505 = vst.msk [vmem:[%s208 + $0x44] sm:$0xf] %vm487, %v472
      %506 = vst.msk [vmem:[%s208 + $0x48] sm:$0xf] %vm487, %v473
      %507 = vst.msk [vmem:[%s208 + $0x4c] sm:$0xf] %vm487, %v474
      %508 = vst.msk [vmem:[%s208 + $0x50] sm:$0xf] %vm487, %v475
      %509 = vst.msk [vmem:[%s208 + $0x54] sm:$0xf] %vm487, %v476
      %510 = vst.msk [vmem:[%s208 + $0x58] sm:$0xf] %vm487, %v477
      %511 = vst.msk [vmem:[%s208 + $0x5c] sm:$0xf] %vm487, %v478
      %512 = vst.msk [vmem:[%s208 + $0x60] sm:$0xf] %vm487, %v479
      %513 = vst.msk [vmem:[%s208 + $0x64] sm:$0xf] %vm487, %v480
      %514 = vst.msk [vmem:[%s208 + $0x68] sm:$0xf] %vm487, %v481
      %515 = vst.msk [vmem:[%s208 + $0x6c] sm:$0xf] %vm487, %v482
      %516 = vst.msk [vmem:[%s208 + $0x70] sm:$0xf] %vm487, %v483
      %517 = vst.msk [vmem:[%s208 + $0x74] sm:$0xf] %vm487, %v484
      %518 = vst.msk [vmem:[%s208 + $0x78] sm:$0xf] %vm487, %v485
      %519 = vst.msk [vmem:[%s208 + $0x7c] sm:$0xf] %vm487, %v486
      %s520 = smul.u32 32, %s19
      %p521 = scmp.lt.s32.totalorder %s18, 1
      %s522 = scalar_select %p521, %s18, 1
      %p523 = scmp.lt.s32.totalorder %s520, 31
      %s524 = scalar_select %p523, %s520, 31
      %s525 = smul.addr %s522, 32
      %s526 = sadd.s32 %s524, %s525
      %s527 = smul.addr %s526, 4
      %s528 = scalar_lea.vmem %s3, %s527
      // Predicated region
      $region33: #{tpu_custom_call.1} parent=31 // pred_check
        %p529 = pneg %p116
      $region34: #{tpu_custom_call.1} parent=31 // pred_check_branch
        %531 = sbr.rel (%p529) target = $region36
      $region35: #{tpu_custom_call.1} parent=31 // pred_region
        %s532 = smul.u32 32, %s19
      $region36: #{tpu_custom_call.1} parent=31 // pred_fallthru
        _
    $region32: #{tpu_custom_call.1} parent=5 // pred_fallthru
      _
    %p533 = scmp.le.s32.totalorder 2, %s9
    // Predicated region
    $region37: #{tpu_custom_call.1} parent=5 // pred_check
      %p534 = pneg %p533
    $region38: #{tpu_custom_call.1} parent=5 // pred_check_branch
      %536 = sbr.rel (%p534) target = $region40
    $region39: #{tpu_custom_call.1} parent=5 // pred_region
      %s537 = ssub.s32 %s9, 2
      // Predicated region
      $region41: #{tpu_custom_call.1} parent=39 // pred_check
        %p538 = pneg %p122
      $region42: #{tpu_custom_call.1} parent=39 // pred_check_branch
        %540 = sbr.rel (%p538) target = $region44
      $region43: #{tpu_custom_call.1} parent=39 // pred_region
        %s541 = smul.u32 32, %s21
        %p542 = scmp.lt.s32.totalorder %s20, 1
        %s543 = scalar_select %p542, %s20, 1
        %p544 = scmp.lt.s32.totalorder %s541, 31
        %s545 = scalar_select %p544, %s541, 31
        %s546 = smul.addr %s543, 32
        %s547 = sadd.s32 %s545, %s546
        %s548 = smul.addr %s547, 4
        %s549 = scalar_lea.vmem %s3, %s548
      $region44: #{tpu_custom_call.1} parent=39 // pred_fallthru
        _
    $region40: #{tpu_custom_call.1} parent=5 // pred_fallthru
      _
  $region6: #{tpu_custom_call.1} parent=0 // loop_footer
    %s13 = sadd.s32 1, %s9
  $region7: #{tpu_custom_call.1} parent=0 // loop_footer_branch
    %8 = sbr.rel target = $region3
  $region8: #{tpu_custom_call.1} parent=0 // loop_exit
    _

</llo_original>
